<compile_context>
chip_gen: v6e
topology: v6e:2x2x1
jax: 0.10.0
libtpu: 0.0.40
codegen_flags: <defaults>
</compile_context>

<pallas_src>
import functools

import jax
import jax.numpy as jnp
from jax import lax
from jax.experimental import pallas as pl
from jax.experimental.pallas import tpu as pltpu


def linear_kernel(x_ref, w_ref, b_ref, o_ref):
    # x_ref: (TM, D)   w_ref: (C, D)  (PyTorch layout, contract on D)
    # b_ref: (1, C)    o_ref: (TM, C)
    acc = lax.dot_general(
        x_ref[...],
        w_ref[...],
        dimension_numbers=(((1,), (1,)), ((), ())),   # x @ W^T on the MXU
        preferred_element_type=jnp.float32,
    )
    o_ref[...] = (acc + b_ref[...]).astype(o_ref.dtype)


def _round_up(x, m):
    return ((x + m - 1) // m) * m


def _pick_tile_m(batch, input_dim, itemsize):
    """Largest multiple-of-8 row tile that keeps the double-buffered x stream
    within a conservative VMEM budget (safe for v7x's 64 MiB VMEM)."""
    budget_bytes = 8 * 1024 * 1024            # x double-buffer budget
    tm = budget_bytes // max(1, 2 * input_dim * itemsize)
    tm = max(8, min(2048, (tm // 8) * 8))      # multiple of 8, capped
    # never make the tile larger than the (8-aligned) batch itself
    return min(tm, _round_up(batch, 8))


@functools.partial(jax.jit, static_argnames=("tile_m",))
def linear_forward(x, weight, bias, *, tile_m=None):
    """x: (B, D); weight: (C, D) (PyTorch nn.Linear layout); bias: (C,)."""
    B, D = x.shape
    C = weight.shape[0]
    b2d = bias.reshape(1, C)

    if tile_m is None:
        tile_m = _pick_tile_m(B, D, x.dtype.itemsize)

    grid = (pl.cdiv(B, tile_m),)

    itemsize = x.dtype.itemsize
    cost = pl.CostEstimate(
        flops=2 * B * D * C,
        transcendentals=0,
        bytes_accessed=itemsize * (B * D + C * D + C + B * C),
    )

    return pl.pallas_call(
        linear_kernel,
        out_shape=jax.ShapeDtypeStruct((B, C), x.dtype),
        grid_spec=pltpu.PrefetchScalarGridSpec(
            num_scalar_prefetch=0,
            grid=grid,
            in_specs=[
                # x: one row-tile per grid step (software pipelined).
                pl.BlockSpec((tile_m, D), lambda i: (i, 0)),
                # W and bias: same block every step -> VMEM resident.
                pl.BlockSpec((C, D), lambda i: (0, 0)),
                pl.BlockSpec((1, C), lambda i: (0, 0)),
            ],
            out_specs=pl.BlockSpec((tile_m, C), lambda i: (i, 0)),
        ),
        compiler_params=pltpu.CompilerParams(
            # Batch tiles are independent -> shardable across TCs (v7x).
            dimension_semantics=("parallel",),
            vmem_limit_bytes=64 * 1024 * 1024,
        ),
        cost_estimate=cost,
    )(x, weight, b2d)
    # TODO(synk): with num_classes < 128 the output stores are lane-sparse;
    # fuse any downstream elementwise/loss work into this kernel when it
    # exists in the real pipeline.


if __name__ == "__main__":
    # Small shapes consistent with nn.Linear(input_dim, num_classes)
    batch, input_dim, num_classes = 8, 32, 8

    key = jax.random.PRNGKey(0)
    kx, kw, kb, kx2 = jax.random.split(key, 4)

    # Deterministic parameter init matching PyTorch's Linear default:
    # uniform(-1/sqrt(input_dim), 1/sqrt(input_dim))
    bound = 1.0 / (input_dim ** 0.5)
    weight = jax.random.uniform(
        kw, (num_classes, input_dim), jnp.float32, minval=-bound, maxval=bound
    )
    bias = jax.random.uniform(
        kb, (num_classes,), jnp.float32, minval=-bound, maxval=bound
    )

    # --- small batch (single tile) ---
    x = jax.random.normal(kx, (batch, input_dim), jnp.float32)
    out = jax.block_until_ready(linear_forward(x, weight, bias))
    ref = x @ weight.T + bias
    assert out.shape == (batch, num_classes)
    assert jnp.allclose(out, ref, atol=1e-5, rtol=1e-5)

    # --- larger, non-tile-divisible batch to exercise the pipelined grid and
    #     the masked partial final tile ---
    big_batch = 520
    x2 = jax.random.normal(kx2, (big_batch, input_dim), jnp.float32)
    out2 = jax.block_until_ready(linear_forward(x2, weight, bias, tile_m=256))
    ref2 = x2 @ weight.T + bias
    assert out2.shape == (big_batch, num_classes)
    assert jnp.allclose(out2, ref2, atol=1e-5, rtol=1e-5)

    print("KERNEL_OK")
</pallas_src>

<mosaic_0001>
module attributes {stable_mosaic.version = 11 : i64} {
  func.func @linear_kernel(%arg0: i32, %arg1: memref<8x32xf32, #tpu.memory_space<vmem>>, %arg2: memref<8x32xf32, #tpu.memory_space<vmem>>, %arg3: memref<1x8xf32, #tpu.memory_space<vmem>>, %arg4: memref<8x8xf32, #tpu.memory_space<vmem>>) attributes {dimension_semantics = [#tpu.dimension_semantics<parallel>], iteration_bounds = array<i64: 1>, scalar_prefetch = 0 : i64, scratch_operands = 0 : i64, tpu.core_type = #tpu.core_type<tc>, window_params = [{transform_indices = @transform_0, window_bounds = array<i64: 8, 32>}, {pipeline_mode = #tpu.pipeline_mode<synchronous>, transform_indices = @transform_1, window_bounds = array<i64: 8, 32>}, {pipeline_mode = #tpu.pipeline_mode<synchronous>, transform_indices = @transform_2, window_bounds = array<i64: 1, 8>}, {transform_indices = @transform_3, window_bounds = array<i64: 8, 8>}]} {
    %c0 = arith.constant 0 : index
    %c0_0 = arith.constant 0 : index
    %0 = vector.load %arg1[%c0, %c0_0] : memref<8x32xf32, #tpu.memory_space<vmem>>, vector<8x32xf32>
    %c0_1 = arith.constant 0 : index
    %c0_2 = arith.constant 0 : index
    %1 = vector.load %arg2[%c0_1, %c0_2] : memref<8x32xf32, #tpu.memory_space<vmem>>, vector<8x32xf32>
    %cst = arith.constant dense<0.000000e+00> : vector<8x8xf32>
    %2 = tpu.matmul %0, %1, %cst {dimension_numbers = #tpu.dot_dimension_numbers<[1], [1], [0], [0], [0, 0, 1, 0], [], []>} : vector<8x32xf32>, vector<8x32xf32>, vector<8x8xf32> -> vector<8x8xf32>
    %c0_3 = arith.constant 0 : index
    %c0_4 = arith.constant 0 : index
    %3 = vector.load %arg3[%c0_3, %c0_4] : memref<1x8xf32, #tpu.memory_space<vmem>>, vector<1x8xf32>
    %4 = vector.broadcast %3 : vector<1x8xf32> to vector<8x8xf32>
    %5 = arith.addf %2, %4 : vector<8x8xf32>
    %c0_5 = arith.constant 0 : index
    %c0_6 = arith.constant 0 : index
    %6 = vector.load %arg4[%c0_5, %c0_6] : memref<8x8xf32, #tpu.memory_space<vmem>>, vector<8x8xf32>
    tpu.vector_store %arg4[%c0_5, %c0_6], %5 {strides = array<i32>} : memref<8x8xf32, #tpu.memory_space<vmem>>, vector<8x8xf32>,
    return
  }
  func.func @transform_0(%arg0: i32) -> (i32, i32) {
    %c0_i32 = arith.constant 0 : i32
    %c0_i32_0 = arith.constant 0 : i32
    return %arg0, %c0_i32 : i32, i32
  }
  func.func @transform_1(%arg0: i32) -> (i32, i32) {
    %c0_i32 = arith.constant 0 : i32
    %c0_i32_0 = arith.constant 0 : i32
    %c0_i32_1 = arith.constant 0 : i32
    return %c0_i32, %c0_i32_0 : i32, i32
  }
  func.func @transform_2(%arg0: i32) -> (i32, i32) {
    %c0_i32 = arith.constant 0 : i32
    %c0_i32_0 = arith.constant 0 : i32
    %c0_i32_1 = arith.constant 0 : i32
    return %c0_i32, %c0_i32_0 : i32, i32
  }
  func.func @transform_3(%arg0: i32) -> (i32, i32) {
    %c0_i32 = arith.constant 0 : i32
    %c0_i32_0 = arith.constant 0 : i32
    return %arg0, %c0_i32 : i32, i32
  }
}

</mosaic_0001>

<llo_original>
// kernel: linear_forward.1
$region0: #{linear_forward.1}
  #allocation0 [shape = 'u32[]', space=smem, size = 0x4, offset = 0x4, fixed_abs, tag = 'smem constant byte address 0x4 - core index']
  #allocation1 [shape = 'u32[144,128]{1,0:T(1,128)}', space=vmem, size = 0x12000, scoped, tag = 'internal scratch']
  %s0 = inlined_call_operand.hbm [shape: f32[8,32], index: 0, kind: input, shape index: {}]
  %s1 = inlined_call_operand.hbm [shape: f32[8,32], index: 1, kind: input, shape index: {}]
  %s2 = inlined_call_operand.vmem [shape: f32[1,8], index: 2, kind: input, shape index: {}]
  %s3 = inlined_call_operand.hbm [shape: f32[8,8], index: 3, kind: output, shape index: {}]
  %s4 = sld [smem:[#allocation0]]
  $region30: #{linear_forward.1} parent=0
    _
  %s6 = ssub.s32 1, %s4
  %s7 = scalar_select 0, %s6, %s4
  $region1: #{linear_forward.1} parent=0
    #allocation2 [shape = 'u8[4096]{0}', space=vmem, size = 0x1000, scoped, tag = 'input window, operand 0, single buffered']
    #allocation3 [shape = 's32[1]{0}', space=sflag, size = 0x4, scoped, tag = 'scoped memory for linear_forward.1']
    #allocation4 [shape = 's32[1]{0}', space=sflag, size = 0x4, scoped, tag = 'scoped memory for linear_forward.1']
    #allocation5 [shape = 'u8[4096]{0}', space=vmem, size = 0x1000, scoped, tag = 'input window, operand 1, single buffered']
    #allocation6 [shape = 's32[1]{0}', space=sflag, size = 0x4, scoped, tag = 'scoped memory for linear_forward.1']
    #allocation7 [shape = 'u8[4096]{0}', space=vmem, size = 0x1000, scoped, tag = 'output window, operand 0, single buffered']
    %8 = vsyncpa [#allocation3], 0
    %9 = vsyncpa [#allocation6], 0
    %10 = vsyncpa [#allocation4], 0
    // Predicated region
    $region2: #{linear_forward.1} parent=1 // pred_check
      _
    $region3: #{linear_forward.1} parent=1 // pred_check_branch
      %12 = sbr.rel (0) target = $region5
    $region4: #{linear_forward.1} parent=1 // pred_region
      %s14 = ssub.s32 128, 128
      %15 = vsyncadd [#allocation3], %s14
      %s17 = sshll.u32 [#allocation2], 4
      %s18 = int_to_ptr.vmem [resolvable:$true] %s17
      %20 = dma.hbm_to_vmem [thread:$0]  %s0, 128, %s18, [#allocation3]
    $region5: #{linear_forward.1} parent=1 // pred_fallthru
      _
    // Predicated region
    $region6: #{linear_forward.1} parent=1 // pred_check
      _
    $region7: #{linear_forward.1} parent=1 // pred_check_branch
      %22 = sbr.rel (0) target = $region9
    $region8: #{linear_forward.1} parent=1 // pred_region
      %s24 = ssub.s32 128, 128
      %25 = vsyncadd [#allocation6], %s24
      %s27 = sshll.u32 [#allocation5], 4
      %s28 = int_to_ptr.vmem [resolvable:$true] %s27
      %30 = dma.hbm_to_vmem [thread:$0]  %s1, 128, %s28, [#allocation6]
    $region9: #{linear_forward.1} parent=1 // pred_fallthru
      _
    // Predicated region
    $region10: #{linear_forward.1} parent=1 // pred_check
      _
    $region11: #{linear_forward.1} parent=1 // pred_check_branch
      %32 = sbr.rel (0) target = $region13
    $region12: #{linear_forward.1} parent=1 // pred_region
      _
    $region13: #{linear_forward.1} parent=1 // pred_fallthru
      _
    // Predicated region
    $region14: #{linear_forward.1} parent=1 // pred_check
      _
    $region15: #{linear_forward.1} parent=1 // pred_check_branch
      %34 = sbr.rel (0) target = $region17
    $region16: #{linear_forward.1} parent=1 // pred_region
      %35 = dma.done [#allocation3], 128
    $region17: #{linear_forward.1} parent=1 // pred_fallthru
      _
    // Predicated region
    $region18: #{linear_forward.1} parent=1 // pred_check
      _
    $region19: #{linear_forward.1} parent=1 // pred_check_branch
      %37 = sbr.rel (0) target = $region21
    $region20: #{linear_forward.1} parent=1 // pred_region
      %38 = dma.done [#allocation6], 128
    $region21: #{linear_forward.1} parent=1 // pred_fallthru
      _
    %v39 = vld [vmem:[#allocation2] sm:$0xff]
    %v40 = vld [vmem:[#allocation5] sm:$0xff]
    %v41 = vld [vmem:[%s2] sm:$0x1]
    %v43 = vlaneseq
    %v44 = vshrl.u32 %v43, 7
    %v45 = vsub.s32 0, %v44
    %v46 = vrot.slane %v41, %v45
    %vm48 = vcmask 261120
    %v50 = vsel %vm48, %v39, 0
    %v53 = vsel %vm48, %v40, 0
    %55 = vmatprep.subr.mxu0 0.0
    %56 = vmatpush1.xpose.msra.mxu0 0.0
    %57 = vmatprep.subr.mxu0 0.0
    %58 = vmatpush1.xpose.msra.mxu0 0.0
    %59 = vmatprep.subr.mxu0 0.0
    %60 = vmatpush1.xpose.msra.mxu0 0.0
    %61 = vmatprep.subr.mxu0 0.0
    %62 = vmatpush1.xpose.msra.mxu0 0.0
    %63 = vmatprep.subr.mxu0 0.0
    %64 = vmatpush1.xpose.msra.mxu0 0.0
    %65 = vmatprep.subr.mxu0 0.0
    %66 = vmatpush1.xpose.msra.mxu0 0.0
    %67 = vmatprep.subr.mxu0 0.0
    %68 = vmatpush1.xpose.msra.mxu0 0.0
    %69 = vmatprep.subr.mxu0 0.0
    %70 = vmatpush1.xpose.msra.mxu0 0.0
    %71 = vmatprep.subr.mxu0 0.0
    %72 = vmatpush1.xpose.msra.mxu0 0.0
    %73 = vmatprep.subr.mxu0 0.0
    %74 = vmatpush1.xpose.msra.mxu0 0.0
    %75 = vmatprep.subr.mxu0 0.0
    %76 = vmatpush1.xpose.msra.mxu0 0.0
    %77 = vmatprep.subr.mxu0 0.0
    %78 = vmatpush1.xpose.msra.mxu0 0.0
    %79 = vmatprep.subr.mxu0 0.0
    %80 = vmatpush1.xpose.msra.mxu0 0.0
    %81 = vmatprep.subr.mxu0 0.0
    %82 = vmatpush1.xpose.msra.mxu0 0.0
    %83 = vmatprep.subr.mxu0 0.0
    %84 = vmatpush1.xpose.msra.mxu0 0.0
    %85 = vmatprep.subr.mxu0 0.0
    %86 = vmatpush1.xpose.msra.mxu0 %v53
    %87 = vmatprep.subr.mxu0 0.0
    %88 = vmatpush2.xpose.msra.mxu0 0.0
    %89 = vmatprep.subr.mxu0 0.0
    %90 = vmatpush2.xpose.msra.mxu0 0.0
    %91 = vmatprep.subr.mxu0 0.0
    %92 = vmatpush2.xpose.msra.mxu0 0.0
    %93 = vmatprep.subr.mxu0 0.0
    %94 = vmatpush2.xpose.msra.mxu0 0.0
    %95 = vmatprep.subr.mxu0 0.0
    %96 = vmatpush2.xpose.msra.mxu0 0.0
    %97 = vmatprep.subr.mxu0 0.0
    %98 = vmatpush2.xpose.msra.mxu0 0.0
    %99 = vmatprep.subr.mxu0 0.0
    %100 = vmatpush2.xpose.msra.mxu0 0.0
    %101 = vmatprep.subr.mxu0 0.0
    %102 = vmatpush2.xpose.msra.mxu0 0.0
    %103 = vmatprep.subr.mxu0 0.0
    %104 = vmatpush2.xpose.msra.mxu0 0.0
    %105 = vmatprep.subr.mxu0 0.0
    %106 = vmatpush2.xpose.msra.mxu0 0.0
    %107 = vmatprep.subr.mxu0 0.0
    %108 = vmatpush2.xpose.msra.mxu0 0.0
    %109 = vmatprep.subr.mxu0 0.0
    %110 = vmatpush2.xpose.msra.mxu0 0.0
    %111 = vmatprep.subr.mxu0 0.0
    %112 = vmatpush2.xpose.msra.mxu0 0.0
    %113 = vmatprep.subr.mxu0 0.0
    %114 = vmatpush2.xpose.msra.mxu0 0.0
    %115 = vmatprep.subr.mxu0 0.0
    %116 = vmatpush2.xpose.msra.mxu0 0.0
    %117 = vmatprep.subr.mxu0 0.0
    %118 = vmatpush2.xpose.msra.mxu0 0.0
    %119 = vmatprep.mubr.f32.mxu0 0.0
    %120 = vmatmul.mubr.f32.gmra.mxu0 %v50
    %v121 = vpop.f32.mrf.mxu0
    %v122 = vadd.f32 %v46, %v121
    %v123 = vpop.f32.mrf.mxu0
    %124 = vdwg.mxu0
    %vm125 = vcmask 64512
    %126 = vst.msk [vmem:[#allocation7] sm:$0xff] %vm125, %v122
    // Predicated region
    $region22: #{linear_forward.1} parent=1 // pred_check
      _
    $region23: #{linear_forward.1} parent=1 // pred_check_branch
      %128 = sbr.rel (0) target = $region25
    $region24: #{linear_forward.1} parent=1 // pred_region
      %s130 = ssub.s32 128, 128
      %131 = vsyncadd [#allocation4], %s130
      %s133 = sshll.u32 [#allocation7], 4
      %s134 = int_to_ptr.vmem [resolvable:$true] %s133
      %136 = dma.vmem_to_hbm [thread:$0]  %s134, 128, %s3, [#allocation4]
    $region25: #{linear_forward.1} parent=1 // pred_fallthru
      _
    // Predicated region
    $region26: #{linear_forward.1} parent=1 // pred_check
      _
    $region27: #{linear_forward.1} parent=1 // pred_check_branch
      %138 = sbr.rel (0) target = $region29
    $region28: #{linear_forward.1} parent=1 // pred_region
      %139 = dma.done [#allocation4], 128
    $region29: #{linear_forward.1} parent=1 // pred_fallthru
      _
    %140 = vsyncpa [#allocation3], 1
    %141 = vsyncpa [#allocation6], 1
    %142 = vsyncpa [#allocation4], 1

</llo_original>
